<compile_context>
chip_gen: v7x
topology: tpu7x:2x2x1
jax: 0.10.0
libtpu: 0.0.40
codegen_flags: <defaults>
</compile_context>

<pallas_src>
import functools
import math

import jax
import jax.numpy as jnp
from jax import lax
from jax.experimental import pallas as pl
from jax.experimental.pallas import tpu as pltpu


# Flattened elements per inner chunk: bounds the (num_buckets, chunk) one-hot
# intermediate (bf16: 32 * 8192 * 2 B = 0.5 MiB) independent of tile size.
_CHUNK_ELEMS = 8192


def _round_up(x: int, m: int) -> int:
    return ((x + m - 1) // m) * m


def _position_bias_kernel(w_ref, o_ref, *, num_heads, tk, tq, rows,
                          num_buckets, max_distance, bidirectional,
                          compute_dtype):
    kb = pl.program_id(0)
    qb = pl.program_id(1)

    nb = num_buckets // 2 if bidirectional else num_buckets
    max_exact = nb // 2
    # Folded constants:
    #   log(x / max_exact) / log(max_distance / max_exact) * (nb - max_exact)
    #     == log(x * inv_max_exact) * c1          (removes the per-element divide;
    # inv_max_exact is exact for power-of-two max_exact, so bucket boundaries match
    # the reference formulation).
    c1 = (nb - max_exact) / math.log(max_distance / max_exact)
    inv_max_exact = 1.0 / max_exact
    log2_tq = tq.bit_length() - 1            # tq is always a power of two

    w = w_ref[...].astype(compute_dtype)     # (H, B), tiny

    n = rows * tq                            # flattened chunk length (lanes)
    # Chunk-invariant index vectors, hoisted out of the row-group loop.
    idx = lax.broadcasted_iota(jnp.int32, (1, n), 1)
    # rel = k - q ; within a chunk: k = kb*tk + r0 + idx//tq, q = qb*tq + idx%tq
    dvec = jnp.right_shift(idx, log2_tq) - jnp.bitwise_and(idx, tq - 1)
    iota_b = lax.broadcasted_iota(jnp.int32, (num_buckets, n), 0)

    def row_group(c, carry):
        if isinstance(c, int):
            r0 = c * rows
        else:
            r0 = pl.multiple_of(c * rows, rows)

        rel = (kb * tk + r0 - qb * tq) + dvec                    # (1, n) int32
        if bidirectional:
            rb = jnp.where(rel > 0, nb, 0)
            rel_pos = jnp.abs(rel)
        else:
            rb = jnp.zeros_like(rel)
            rel_pos = jnp.maximum(-rel, 0)
        is_small = rel_pos < max_exact
        # clamp to 1.0 so log() is finite on lanes masked out by `is_small`
        rel_f = jnp.maximum(rel_pos.astype(jnp.float32), 1.0)
        # f32 log then truncation toward zero, matching `.to(torch.long)`
        if_large = max_exact + (jnp.log(rel_f * inv_max_exact) * c1).astype(jnp.int32)
        if_large = jnp.minimum(if_large, nb - 1)
        bucket = rb + jnp.where(is_small, rel_pos, if_large)     # (1, n) int32

        # Embedding lookup weight[:, bucket] as a one-hot matmul (MXU friendly).
        onehot = (iota_b == bucket).astype(compute_dtype)        # (B, n)
        vals = jnp.dot(w, onehot, preferred_element_type=jnp.float32)  # (H, n)
        # TODO(synk): lane-splitting reshape -> VMEM relayout; see header note.
        o_ref[:, pl.ds(r0, rows), :] = vals.reshape(
            num_heads, rows, tq).astype(o_ref.dtype)
        return carry

    num_chunks = tk // rows
    if num_chunks == 1:
        row_group(0, 0)
    else:
        lax.fori_loop(0, num_chunks, row_group, 0)


def position_embedding_bias(weight, key_length, query_length, *, max_distance,
                            bidirectional=True, compute_dtype=jnp.bfloat16,
                            out_dtype=jnp.float32):
    """Pallas equivalent of PositionEmbeddingTH.forward(key_length, query_length).

    compute_dtype: dtype fed to the MXU for the one-hot gather. bfloat16
      (default) keeps the one-hot exact and only rounds the weight values
      (<= 2^-9 relative); pass jnp.float32 for bit-exact f32 results.
    """
    num_heads, num_buckets = weight.shape

    nb = num_buckets // 2 if bidirectional else num_buckets
    if nb // 2 < 1 or max_distance <= nb // 2:
        raise ValueError("num_buckets / max_distance too small for the T5 "
                         "relative-position bucket formula")

    # --- lane-dense tiling with wrapper-side padding (no full-extent fallback) ---
    # Q maps to lanes: pad to a multiple of 128 and use a 512/256/128-wide tile.
    qp = _round_up(query_length, 128)
    tq = next(t for t in (512, 256, 128) if qp % t == 0)
    # K maps to sublanes: small K -> a single 8-aligned block; large K -> 128/256 tiles.
    kp = _round_up(key_length, 8)
    if kp <= 256:
        tk = kp
    else:
        kp = _round_up(key_length, 128)
        tk = 256 if kp % 256 == 0 else 128

    # Rows per inner chunk so the (num_buckets, rows*tq) one-hot stays bounded.
    rows = math.gcd(min(tk, max(8, _CHUNK_ELEMS // tq)), tk)

    kernel = functools.partial(
        _position_bias_kernel,
        num_heads=num_heads, tk=tk, tq=tq, rows=rows,
        num_buckets=num_buckets, max_distance=max_distance,
        bidirectional=bidirectional, compute_dtype=compute_dtype)

    # Note: for tiny K/Q the grid is (1, 1); splitting heads across the grid to
    # occupy both v7x TensorCores would force recomputing the one-hot per head
    # block, so it is intentionally not done for these small shapes.
    out_padded = pl.pallas_call(
        kernel,
        out_shape=jax.ShapeDtypeStruct((num_heads, kp, qp), out_dtype),
        grid_spec=pltpu.PrefetchScalarGridSpec(
            num_scalar_prefetch=0,
            grid=(kp // tk, qp // tq),
            in_specs=[pl.BlockSpec((num_heads, num_buckets),
                                   lambda kb, qb: (0, 0))],
            out_specs=pl.BlockSpec((num_heads, tk, tq),
                                   lambda kb, qb: (0, kb, qb)),
        ),
        compiler_params=pltpu.CompilerParams(
            dimension_semantics=("parallel", "parallel"),
            vmem_limit_bytes=32 * 1024 * 1024),
    )(weight)

    if kp == key_length and qp == query_length:
        return out_padded
    return out_padded[:, :key_length, :query_length]


def _reference_bias(weight, key_length, query_length, *, max_distance,
                    bidirectional=True):
    """Pure-JAX reference mirroring the PyTorch module exactly (f32)."""
    num_heads, num_buckets = weight.shape
    context = jnp.arange(query_length, dtype=jnp.int32)[:, None]
    memory = jnp.arange(key_length, dtype=jnp.int32)[None, :]
    rel = memory - context                                    # (q, k)

    nb = num_buckets
    if bidirectional:
        nb //= 2
        rb = (rel > 0).astype(jnp.int32) * nb
        rel_pos = jnp.abs(rel)
    else:
        rb = jnp.zeros_like(rel)
        rel_pos = -jnp.minimum(rel, 0)

    max_exact = nb // 2
    is_small = rel_pos < max_exact
    rel_f = jnp.maximum(rel_pos.astype(jnp.float32), 1.0)
    if_large = max_exact + (
        jnp.log(rel_f / max_exact) / math.log(max_distance / max_exact)
        * (nb - max_exact)).astype(jnp.int32)
    if_large = jnp.minimum(if_large, nb - 1)
    bucket = rb + jnp.where(is_small, rel_pos, if_large)       # (q, k)

    values = weight.T[bucket]                                  # (q, k, H)
    return jnp.transpose(values, (2, 1, 0))                    # (H, k, q)


if __name__ == "__main__":
    num_heads = 8
    num_buckets = 32
    max_distance = 128

    key = jax.random.PRNGKey(0)
    # Deterministic stand-in for torch.randn(num_heads, num_buckets)
    weight = jax.random.normal(key, (num_heads, num_buckets), dtype=jnp.float32)

    # 1) Default (bf16 one-hot / bf16 weight-feed) fast path.
    K, Q = 16, 16
    out = position_embedding_bias(weight, K, Q, max_distance=max_distance,
                                  bidirectional=True)
    out = jax.block_until_ready(out)
    ref = _reference_bias(weight, K, Q, max_distance=max_distance,
                          bidirectional=True)
    assert out.shape == (num_heads, K, Q)
    assert jnp.allclose(out, ref, rtol=1e-2, atol=1e-2), \
        "bf16-path mismatch vs reference"

    # 2) Bit-exact f32 path on ragged (non-128-multiple) lengths, exercising the
    #    wrapper-side padding + slicing.
    K2, Q2 = 40, 24
    out2 = position_embedding_bias(weight, K2, Q2, max_distance=max_distance,
                                   bidirectional=True,
                                   compute_dtype=jnp.float32)
    out2 = jax.block_until_ready(out2)
    ref2 = _reference_bias(weight, K2, Q2, max_distance=max_distance,
                           bidirectional=True)
    assert out2.shape == (num_heads, K2, Q2)
    assert jnp.allclose(out2, ref2, atol=1e-6), "f32-path mismatch vs reference"

    print("KERNEL_OK")
</pallas_src>

<mosaic_0001>
module attributes {stable_mosaic.version = 11 : i64} {
  func.func @_position_bias_kernel(%arg0: i32, %arg1: i32, %arg2: memref<8x32xf32, #tpu.memory_space<vmem>>, %arg3: memref<8x16x128xf32, #tpu.memory_space<vmem>>) attributes {dimension_semantics = [#tpu.dimension_semantics<parallel>, #tpu.dimension_semantics<parallel>], iteration_bounds = array<i64: 1, 1>, scalar_prefetch = 0 : i64, scratch_operands = 0 : i64, tpu.core_type = #tpu.core_type<tc>, window_params = [{pipeline_mode = #tpu.pipeline_mode<synchronous>, transform_indices = @transform_0, window_bounds = array<i64: 8, 32>}, {transform_indices = @transform_1, window_bounds = array<i64: 8, 16, 128>}]} {
    %c0 = arith.constant 0 : index
    %c0_0 = arith.constant 0 : index
    %0 = vector.load %arg2[%c0, %c0_0] : memref<8x32xf32, #tpu.memory_space<vmem>>, vector<8x32xf32>
    %1 = arith.truncf %0 : vector<8x32xf32> to vector<8x32xbf16>
    %2 = tpu.iota {dimensions = array<i32: 1>} : vector<1x2048xi32>
    %c7_i32 = arith.constant 7 : i32
    %3 = vector.broadcast %c7_i32 : i32 to vector<1x2048xi32>
    %4 = arith.shrsi %2, %3 : vector<1x2048xi32>
    %c127_i32 = arith.constant 127 : i32
    %5 = vector.broadcast %c127_i32 : i32 to vector<1x2048xi32>
    %6 = arith.andi %2, %5 : vector<1x2048xi32>
    %7 = arith.subi %4, %6 : vector<1x2048xi32>
    %8 = tpu.iota {dimensions = array<i32: 0>} : vector<32x2048xi32>
    %c16_i32 = arith.constant 16 : i32
    %9 = arith.muli %arg0, %c16_i32 : i32
    %c0_i32 = arith.constant 0 : i32
    %10 = arith.addi %9, %c0_i32 : i32
    %c128_i32 = arith.constant 128 : i32
    %11 = arith.muli %arg1, %c128_i32 : i32
    %12 = arith.subi %10, %11 : i32
    %13 = vector.broadcast %12 : i32 to vector<1x2048xi32>
    %14 = arith.addi %13, %7 : vector<1x2048xi32>
    %c0_i32_1 = arith.constant 0 : i32
    %15 = vector.broadcast %c0_i32_1 : i32 to vector<1x2048xi32>
    %16 = arith.cmpi sgt, %14, %15 : vector<1x2048xi32>
    %c16_i32_2 = arith.constant 16 : i32
    %c0_i32_3 = arith.constant 0 : i32
    %17 = vector.broadcast %c16_i32_2 : i32 to vector<1x2048xi32>
    %18 = vector.broadcast %c0_i32_3 : i32 to vector<1x2048xi32>
    %19 = arith.select %16, %17, %18 : vector<1x2048xi1>, vector<1x2048xi32>
    %20 = math.absi %14 : vector<1x2048xi32>
    %c8_i32 = arith.constant 8 : i32
    %21 = vector.broadcast %c8_i32 : i32 to vector<1x2048xi32>
    %22 = arith.cmpi slt, %20, %21 : vector<1x2048xi32>
    %23 = arith.sitofp %20 : vector<1x2048xi32> to vector<1x2048xf32>
    %cst = arith.constant 1.000000e+00 : f32
    %24 = vector.broadcast %cst : f32 to vector<1x2048xf32>
    %25 = arith.maximumf %23, %24 : vector<1x2048xf32>
    %cst_4 = arith.constant 1.250000e-01 : f32
    %26 = vector.broadcast %cst_4 : f32 to vector<1x2048xf32>
    %27 = arith.mulf %25, %26 : vector<1x2048xf32>
    %28 = math.log %27 : vector<1x2048xf32>
    %cst_5 = arith.constant 2.885390e+00 : f32
    %29 = vector.broadcast %cst_5 : f32 to vector<1x2048xf32>
    %30 = arith.mulf %28, %29 : vector<1x2048xf32>
    %31 = arith.fptosi %30 : vector<1x2048xf32> to vector<1x2048xi32>
    %c8_i32_6 = arith.constant 8 : i32
    %32 = vector.broadcast %c8_i32_6 : i32 to vector<1x2048xi32>
    %33 = arith.addi %32, %31 : vector<1x2048xi32>
    %c15_i32 = arith.constant 15 : i32
    %34 = vector.broadcast %c15_i32 : i32 to vector<1x2048xi32>
    %35 = arith.minsi %33, %34 : vector<1x2048xi32>
    %36 = arith.select %22, %20, %35 : vector<1x2048xi1>, vector<1x2048xi32>
    %37 = arith.addi %19, %36 : vector<1x2048xi32>
    %38 = vector.broadcast %37 : vector<1x2048xi32> to vector<32x2048xi32>
    %39 = arith.cmpi eq, %8, %38 : vector<32x2048xi32>
    %40 = arith.extui %39 : vector<32x2048xi1> to vector<32x2048xi32>
    %41 = arith.sitofp %40 : vector<32x2048xi32> to vector<32x2048xf32>
    %42 = arith.truncf %41 : vector<32x2048xf32> to vector<32x2048xbf16>
    %cst_7 = arith.constant dense<0.000000e+00> : vector<8x2048xf32>
    %43 = tpu.matmul %1, %42, %cst_7 {dimension_numbers = #tpu.dot_dimension_numbers<[1], [0], [0], [1], [0, 0, 1, 1], [], []>} : vector<8x32xbf16>, vector<32x2048xbf16>, vector<8x2048xf32> -> vector<8x2048xf32>
    %44 = vector.shape_cast %43 : vector<8x2048xf32> to vector<8x16x128xf32>
    %c0_8 = arith.constant 0 : index
    %c0_9 = arith.constant 0 : index
    %c0_10 = arith.constant 0 : index
    %45 = vector.load %arg3[%c0_8, %c0_9, %c0_10] : memref<8x16x128xf32, #tpu.memory_space<vmem>>, vector<8x16x128xf32>
    tpu.vector_store %arg3[%c0_8, %c0_9, %c0_10], %44 {strides = array<i32>} : memref<8x16x128xf32, #tpu.memory_space<vmem>>, vector<8x16x128xf32>,
    return
  }
  func.func @transform_0(%arg0: i32, %arg1: i32) -> (i32, i32) {
    %c0_i32 = arith.constant 0 : i32
    %c0_i32_0 = arith.constant 0 : i32
    %c0_i32_1 = arith.constant 0 : i32
    return %c0_i32, %c0_i32_0 : i32, i32
  }
  func.func @transform_1(%arg0: i32, %arg1: i32) -> (i32, i32, i32) {
    %c0_i32 = arith.constant 0 : i32
    %c0_i32_0 = arith.constant 0 : i32
    return %c0_i32, %arg0, %arg1 : i32, i32, i32
  }
}

</mosaic_0001>

<llo_original>
// kernel: tpu_custom_call.1
$region0: #{tpu_custom_call.1}
  #allocation0 [shape = 'u32[]', space=smem, size = 0x4, offset = 0x4, fixed_abs, tag = 'smem constant byte address 0x4 - core index']
  #allocation1 [shape = 'u32[144,128]{1,0:T(1,128)}', space=vmem, size = 0x12000, scoped, tag = 'internal scratch']
  %s0 = inlined_call_operand.hbm [shape: f32[8,32], index: 0, kind: input, shape index: {}]
  %s1 = inlined_call_operand.hbm [shape: f32[8,16,128], index: 1, kind: output, shape index: {}]
  %s2 = sld [smem:[#allocation0]]
  $region18: #{tpu_custom_call.1} parent=0
    _
  %s4 = ssub.s32 1, %s2
  %s5 = scalar_select 0, %s4, %s2
  $region1: #{tpu_custom_call.1} parent=0
    #allocation2 [shape = 'u8[4096]{0}', space=vmem, size = 0x1000, scoped, tag = 'input window, operand 0, single buffered']
    #allocation3 [shape = 's32[1]{0}', space=sflag, size = 0x4, scoped, tag = 'scoped memory for tpu_custom_call.1']
    #allocation4 [shape = 's32[1]{0}', space=sflag, size = 0x4, scoped, tag = 'scoped memory for tpu_custom_call.1']
    #allocation5 [shape = 'u8[65536]{0}', space=vmem, size = 0x10000, scoped, tag = 'output window, operand 0, single buffered']
    %6 = vsyncpa [#allocation3], 0
    %7 = vsyncpa [#allocation4], 0
    // Predicated region
    $region2: #{tpu_custom_call.1} parent=1 // pred_check
      _
    $region3: #{tpu_custom_call.1} parent=1 // pred_check_branch
      %9 = sbr.rel (0) target = $region5
    $region4: #{tpu_custom_call.1} parent=1 // pred_region
      %s11 = ssub.s32 128, 128
      %12 = vsyncadd [#allocation3], %s11
      %s14 = sshll.u32 [#allocation2], 4
      %s15 = int_to_ptr.vmem [resolvable:$true] %s14
      %17 = dma.hbm_to_vmem [thread:$0]  %s0, 128, %s15, [#allocation3]
    $region5: #{tpu_custom_call.1} parent=1 // pred_fallthru
      _
    // Predicated region
    $region6: #{tpu_custom_call.1} parent=1 // pred_check
      _
    $region7: #{tpu_custom_call.1} parent=1 // pred_check_branch
      %19 = sbr.rel (0) target = $region9
    $region8: #{tpu_custom_call.1} parent=1 // pred_region
      %20 = dma.done [#allocation3], 128
    $region9: #{tpu_custom_call.1} parent=1 // pred_fallthru
      _
    %v22 = vld [vmem:[#allocation2] sm:$0xff]
    %v23 = vpack.c.bf16 %v22, %v22
    %v24 = vlaneseq
    %v25 = vand.u32 %v24, 127
    %v26 = vadd.s32 %v25, 128
    %v27 = vadd.s32 %v25, 256
    %v28 = vadd.s32 %v25, 384
    %v29 = vadd.s32 %v25, 512
    %v30 = vadd.s32 %v25, 640
    %v31 = vadd.s32 %v25, 768
    %v32 = vadd.s32 %v25, 896
    %v33 = vadd.s32 %v25, 1024
    %v34 = vadd.s32 %v25, 1152
    %v35 = vadd.s32 %v25, 1280
    %v36 = vadd.s32 %v25, 1408
    %v37 = vadd.s32 %v25, 1536
    %v38 = vadd.s32 %v25, 1664
    %v39 = vadd.s32 %v25, 1792
    %v40 = vadd.s32 %v25, 1920
    %v41 = vshra.s32 %v25, 7
    %v42 = vshra.s32 %v26, 7
    %v43 = vshra.s32 %v27, 7
    %v44 = vshra.s32 %v28, 7
    %v45 = vshra.s32 %v29, 7
    %v46 = vshra.s32 %v30, 7
    %v47 = vshra.s32 %v31, 7
    %v48 = vshra.s32 %v32, 7
    %v49 = vshra.s32 %v33, 7
    %v50 = vshra.s32 %v34, 7
    %v51 = vshra.s32 %v35, 7
    %v52 = vshra.s32 %v36, 7
    %v53 = vshra.s32 %v37, 7
    %v54 = vshra.s32 %v38, 7
    %v55 = vshra.s32 %v39, 7
    %v56 = vshra.s32 %v40, 7
    %v57 = vand.u32 %v25, 127
    %v58 = vand.u32 %v26, 127
    %v59 = vand.u32 %v27, 127
    %v60 = vand.u32 %v28, 127
    %v61 = vand.u32 %v29, 127
    %v62 = vand.u32 %v30, 127
    %v63 = vand.u32 %v31, 127
    %v64 = vand.u32 %v32, 127
    %v65 = vand.u32 %v33, 127
    %v66 = vand.u32 %v34, 127
    %v67 = vand.u32 %v35, 127
    %v68 = vand.u32 %v36, 127
    %v69 = vand.u32 %v37, 127
    %v70 = vand.u32 %v38, 127
    %v71 = vand.u32 %v39, 127
    %v72 = vand.u32 %v40, 127
    %v73 = vsub.s32 %v41, %v57
    %v74 = vsub.s32 %v42, %v58
    %v75 = vsub.s32 %v43, %v59
    %v76 = vsub.s32 %v44, %v60
    %v77 = vsub.s32 %v45, %v61
    %v78 = vsub.s32 %v46, %v62
    %v79 = vsub.s32 %v47, %v63
    %v80 = vsub.s32 %v48, %v64
    %v81 = vsub.s32 %v49, %v65
    %v82 = vsub.s32 %v50, %v66
    %v83 = vsub.s32 %v51, %v67
    %v84 = vsub.s32 %v52, %v68
    %v85 = vsub.s32 %v53, %v69
    %v86 = vsub.s32 %v54, %v70
    %v87 = vsub.s32 %v55, %v71
    %v88 = vsub.s32 %v56, %v72
    %v89 = vlaneseq
    %v90 = vshrl.u32 %v89, 7
    %v91 = vadd.s32 %v90, 8
    %v92 = vadd.s32 %v90, 16
    %v93 = vadd.s32 %v90, 24
    %s94 = smul.u32 0, 16
    %s95 = smul.u32 0, 128
    %s96 = ssub.s32 %s94, %s95
    %v97 = vstv %s96
    %v98 = vadd.s32 %v97, %v73
    %v99 = vadd.s32 %v97, %v74
    %v100 = vadd.s32 %v97, %v75
    %v101 = vadd.s32 %v97, %v76
    %v102 = vadd.s32 %v97, %v77
    %v103 = vadd.s32 %v97, %v78
    %v104 = vadd.s32 %v97, %v79
    %v105 = vadd.s32 %v97, %v80
    %v106 = vadd.s32 %v97, %v81
    %v107 = vadd.s32 %v97, %v82
    %v108 = vadd.s32 %v97, %v83
    %v109 = vadd.s32 %v97, %v84
    %v110 = vadd.s32 %v97, %v85
    %v111 = vadd.s32 %v97, %v86
    %v112 = vadd.s32 %v97, %v87
    %v113 = vadd.s32 %v97, %v88
    %vm114 = vcmp.gt.s32.totalorder %v98, 0
    %vm115 = vcmp.gt.s32.totalorder %v99, 0
    %vm116 = vcmp.gt.s32.totalorder %v100, 0
    %vm117 = vcmp.gt.s32.totalorder %v101, 0
    %vm118 = vcmp.gt.s32.totalorder %v102, 0
    %vm119 = vcmp.gt.s32.totalorder %v103, 0
    %vm120 = vcmp.gt.s32.totalorder %v104, 0
    %vm121 = vcmp.gt.s32.totalorder %v105, 0
    %vm122 = vcmp.gt.s32.totalorder %v106, 0
    %vm123 = vcmp.gt.s32.totalorder %v107, 0
    %vm124 = vcmp.gt.s32.totalorder %v108, 0
    %vm125 = vcmp.gt.s32.totalorder %v109, 0
    %vm126 = vcmp.gt.s32.totalorder %v110, 0
    %vm127 = vcmp.gt.s32.totalorder %v111, 0
    %vm128 = vcmp.gt.s32.totalorder %v112, 0
    %vm129 = vcmp.gt.s32.totalorder %v113, 0
    %v130 = vsel %vm114, 16, 0
    %v131 = vsel %vm115, 16, 0
    %v132 = vsel %vm116, 16, 0
    %v133 = vsel %vm117, 16, 0
    %v134 = vsel %vm118, 16, 0
    %v135 = vsel %vm119, 16, 0
    %v136 = vsel %vm120, 16, 0
    %v137 = vsel %vm121, 16, 0
    %v138 = vsel %vm122, 16, 0
    %v139 = vsel %vm123, 16, 0
    %v140 = vsel %vm124, 16, 0
    %v141 = vsel %vm125, 16, 0
    %v142 = vsel %vm126, 16, 0
    %v143 = vsel %vm127, 16, 0
    %v144 = vsel %vm128, 16, 0
    %v145 = vsel %vm129, 16, 0
    %vm146 = vcmp.lt.s32.totalorder %v98, 0
    %v147 = vsub.s32 0, %v98
    %v148 = vsel %vm146, %v147, %v98
    %vm149 = vcmp.lt.s32.totalorder %v99, 0
    %v150 = vsub.s32 0, %v99
    %v151 = vsel %vm149, %v150, %v99
    %vm152 = vcmp.lt.s32.totalorder %v100, 0
    %v153 = vsub.s32 0, %v100
    %v154 = vsel %vm152, %v153, %v100
    %vm155 = vcmp.lt.s32.totalorder %v101, 0
    %v156 = vsub.s32 0, %v101
    %v157 = vsel %vm155, %v156, %v101
    %vm158 = vcmp.lt.s32.totalorder %v102, 0
    %v159 = vsub.s32 0, %v102
    %v160 = vsel %vm158, %v159, %v102
    %vm161 = vcmp.lt.s32.totalorder %v103, 0
    %v162 = vsub.s32 0, %v103
    %v163 = vsel %vm161, %v162, %v103
    %vm164 = vcmp.lt.s32.totalorder %v104, 0
    %v165 = vsub.s32 0, %v104
    %v166 = vsel %vm164, %v165, %v104
    %vm167 = vcmp.lt.s32.totalorder %v105, 0
    %v168 = vsub.s32 0, %v105
    %v169 = vsel %vm167, %v168, %v105
    %vm170 = vcmp.lt.s32.totalorder %v106, 0
    %v171 = vsub.s32 0, %v106
    %v172 = vsel %vm170, %v171, %v106
    %vm173 = vcmp.lt.s32.totalorder %v107, 0
    %v174 = vsub.s32 0, %v107
    %v175 = vsel %vm173, %v174, %v107
    %vm176 = vcmp.lt.s32.totalorder %v108, 0
    %v177 = vsub.s32 0, %v108
    %v178 = vsel %vm176, %v177, %v108
    %vm179 = vcmp.lt.s32.totalorder %v109, 0
    %v180 = vsub.s32 0, %v109
    %v181 = vsel %vm179, %v180, %v109
    %vm182 = vcmp.lt.s32.totalorder %v110, 0
    %v183 = vsub.s32 0, %v110
    %v184 = vsel %vm182, %v183, %v110
    %vm185 = vcmp.lt.s32.totalorder %v111, 0
    %v186 = vsub.s32 0, %v111
    %v187 = vsel %vm185, %v186, %v111
    %vm188 = vcmp.lt.s32.totalorder %v112, 0
    %v189 = vsub.s32 0, %v112
    %v190 = vsel %vm188, %v189, %v112
    %vm191 = vcmp.lt.s32.totalorder %v113, 0
    %v192 = vsub.s32 0, %v113
    %v193 = vsel %vm191, %v192, %v113
    %vm194 = vcmp.lt.s32.totalorder %v148, 8
    %vm195 = vcmp.lt.s32.totalorder %v151, 8
    %vm196 = vcmp.lt.s32.totalorder %v154, 8
    %vm197 = vcmp.lt.s32.totalorder %v157, 8
    %vm198 = vcmp.lt.s32.totalorder %v160, 8
    %vm199 = vcmp.lt.s32.totalorder %v163, 8
    %vm200 = vcmp.lt.s32.totalorder %v166, 8
    %vm201 = vcmp.lt.s32.totalorder %v169, 8
    %vm202 = vcmp.lt.s32.totalorder %v172, 8
    %vm203 = vcmp.lt.s32.totalorder %v175, 8
    %vm204 = vcmp.lt.s32.totalorder %v178, 8
    %vm205 = vcmp.lt.s32.totalorder %v181, 8
    %vm206 = vcmp.lt.s32.totalorder %v184, 8
    %vm207 = vcmp.lt.s32.totalorder %v187, 8
    %vm208 = vcmp.lt.s32.totalorder %v190, 8
    %vm209 = vcmp.lt.s32.totalorder %v193, 8
    %v210 = vcvt.s32.f32 %v148
    %v211 = vcvt.s32.f32 %v151
    %v212 = vcvt.s32.f32 %v154
    %v213 = vcvt.s32.f32 %v157
    %v214 = vcvt.s32.f32 %v160
    %v215 = vcvt.s32.f32 %v163
    %v216 = vcvt.s32.f32 %v166
    %v217 = vcvt.s32.f32 %v169
    %v218 = vcvt.s32.f32 %v172
    %v219 = vcvt.s32.f32 %v175
    %v220 = vcvt.s32.f32 %v178
    %v221 = vcvt.s32.f32 %v181
    %v222 = vcvt.s32.f32 %v184
    %v223 = vcvt.s32.f32 %v187
    %v224 = vcvt.s32.f32 %v190
    %v225 = vcvt.s32.f32 %v193
    %v226 = vmax.f32 %v210, 1.0
    %v227 = vmax.f32 %v211, 1.0
    %v228 = vmax.f32 %v212, 1.0
    %v229 = vmax.f32 %v213, 1.0
    %v230 = vmax.f32 %v214, 1.0
    %v231 = vmax.f32 %v215, 1.0
    %v232 = vmax.f32 %v216, 1.0
    %v233 = vmax.f32 %v217, 1.0
    %v234 = vmax.f32 %v218, 1.0
    %v235 = vmax.f32 %v219, 1.0
    %v236 = vmax.f32 %v220, 1.0
    %v237 = vmax.f32 %v221, 1.0
    %v238 = vmax.f32 %v222, 1.0
    %v239 = vmax.f32 %v223, 1.0
    %v240 = vmax.f32 %v224, 1.0
    %v241 = vmax.f32 %v225, 1.0
    %v242 = vmul.f32 %v226, 0.125
    %v243 = vmul.f32 %v227, 0.125
    %v244 = vmul.f32 %v228, 0.125
    %v245 = vmul.f32 %v229, 0.125
    %v246 = vmul.f32 %v230, 0.125
    %v247 = vmul.f32 %v231, 0.125
    %v248 = vmul.f32 %v232, 0.125
    %v249 = vmul.f32 %v233, 0.125
    %v250 = vmul.f32 %v234, 0.125
    %v251 = vmul.f32 %v235, 0.125
    %v252 = vmul.f32 %v236, 0.125
    %v253 = vmul.f32 %v237, 0.125
    %v254 = vmul.f32 %v238, 0.125
    %v255 = vmul.f32 %v239, 0.125
    %v256 = vmul.f32 %v240, 0.125
    %v257 = vmul.f32 %v241, 0.125
    %v258 = vlog2.pop %v242
    %v259 = vmul.f32 %v258, 0.6931472
    %v260 = vlog2.pop %v243
    %v261 = vmul.f32 %v260, 0.6931472
    %v262 = vlog2.pop %v244
    %v263 = vmul.f32 %v262, 0.6931472
    %v264 = vlog2.pop %v245
    %v265 = vmul.f32 %v264, 0.6931472
    %v266 = vlog2.pop %v246
    %v267 = vmul.f32 %v266, 0.6931472
    %v268 = vlog2.pop %v247
    %v269 = vmul.f32 %v268, 0.6931472
    %v270 = vlog2.pop %v248
    %v271 = vmul.f32 %v270, 0.6931472
    %v272 = vlog2.pop %v249
    %v273 = vmul.f32 %v272, 0.6931472
    %v274 = vlog2.pop %v250
    %v275 = vmul.f32 %v274, 0.6931472
    %v276 = vlog2.pop %v251
    %v277 = vmul.f32 %v276, 0.6931472
    %v278 = vlog2.pop %v252
    %v279 = vmul.f32 %v278, 0.6931472
    %v280 = vlog2.pop %v253
    %v281 = vmul.f32 %v280, 0.6931472
    %v282 = vlog2.pop %v254
    %v283 = vmul.f32 %v282, 0.6931472
    %v284 = vlog2.pop %v255
    %v285 = vmul.f32 %v284, 0.6931472
    %v286 = vlog2.pop %v256
    %v287 = vmul.f32 %v286, 0.6931472
    %v288 = vlog2.pop %v257
    %v289 = vmul.f32 %v288, 0.6931472
    %v290 = vmul.f32 %v259, 2.88539
    %v291 = vmul.f32 %v261, 2.88539
    %v292 = vmul.f32 %v263, 2.88539
    %v293 = vmul.f32 %v265, 2.88539
    %v294 = vmul.f32 %v267, 2.88539
    %v295 = vmul.f32 %v269, 2.88539
    %v296 = vmul.f32 %v271, 2.88539
    %v297 = vmul.f32 %v273, 2.88539
    %v298 = vmul.f32 %v275, 2.88539
    %v299 = vmul.f32 %v277, 2.88539
    %v300 = vmul.f32 %v279, 2.88539
    %v301 = vmul.f32 %v281, 2.88539
    %v302 = vmul.f32 %v283, 2.88539
    %v303 = vmul.f32 %v285, 2.88539
    %v304 = vmul.f32 %v287, 2.88539
    %v305 = vmul.f32 %v289, 2.88539
    %v306 = vcvt.f32.s32.to.zero.pseudo %v290
    %v307 = vcvt.f32.s32.to.zero.pseudo %v291
    %v308 = vcvt.f32.s32.to.zero.pseudo %v292
    %v309 = vcvt.f32.s32.to.zero.pseudo %v293
    %v310 = vcvt.f32.s32.to.zero.pseudo %v294
    %v311 = vcvt.f32.s32.to.zero.pseudo %v295
    %v312 = vcvt.f32.s32.to.zero.pseudo %v296
    %v313 = vcvt.f32.s32.to.zero.pseudo %v297
    %v314 = vcvt.f32.s32.to.zero.pseudo %v298
    %v315 = vcvt.f32.s32.to.zero.pseudo %v299
    %v316 = vcvt.f32.s32.to.zero.pseudo %v300
    %v317 = vcvt.f32.s32.to.zero.pseudo %v301
    %v318 = vcvt.f32.s32.to.zero.pseudo %v302
    %v319 = vcvt.f32.s32.to.zero.pseudo %v303
    %v320 = vcvt.f32.s32.to.zero.pseudo %v304
    %v321 = vcvt.f32.s32.to.zero.pseudo %v305
    %v322 = vadd.s32 %v306, 8
    %v323 = vadd.s32 %v307, 8
    %v324 = vadd.s32 %v308, 8
    %v325 = vadd.s32 %v309, 8
    %v326 = vadd.s32 %v310, 8
    %v327 = vadd.s32 %v311, 8
    %v328 = vadd.s32 %v312, 8
    %v329 = vadd.s32 %v313, 8
    %v330 = vadd.s32 %v314, 8
    %v331 = vadd.s32 %v315, 8
    %v332 = vadd.s32 %v316, 8
    %v333 = vadd.s32 %v317, 8
    %v334 = vadd.s32 %v318, 8
    %v335 = vadd.s32 %v319, 8
    %v336 = vadd.s32 %v320, 8
    %v337 = vadd.s32 %v321, 8
    %vm338 = vcmp.lt.s32.totalorder %v322, 15
    %v339 = vsel %vm338, %v322, 15
    %vm340 = vcmp.lt.s32.totalorder %v323, 15
    %v341 = vsel %vm340, %v323, 15
    %vm342 = vcmp.lt.s32.totalorder %v324, 15
    %v343 = vsel %vm342, %v324, 15
    %vm344 = vcmp.lt.s32.totalorder %v325, 15
    %v345 = vsel %vm344, %v325, 15
    %vm346 = vcmp.lt.s32.totalorder %v326, 15
    %v347 = vsel %vm346, %v326, 15
    %vm348 = vcmp.lt.s32.totalorder %v327, 15
    %v349 = vsel %vm348, %v327, 15
    %vm350 = vcmp.lt.s32.totalorder %v328, 15
    %v351 = vsel %vm350, %v328, 15
    %vm352 = vcmp.lt.s32.totalorder %v329, 15
    %v353 = vsel %vm352, %v329, 15
    %vm354 = vcmp.lt.s32.totalorder %v330, 15
    %v355 = vsel %vm354, %v330, 15
    %vm356 = vcmp.lt.s32.totalorder %v331, 15
    %v357 = vsel %vm356, %v331, 15
    %vm358 = vcmp.lt.s32.totalorder %v332, 15
    %v359 = vsel %vm358, %v332, 15
    %vm360 = vcmp.lt.s32.totalorder %v333, 15
    %v361 = vsel %vm360, %v333, 15
    %vm362 = vcmp.lt.s32.totalorder %v334, 15
    %v363 = vsel %vm362, %v334, 15
    %vm364 = vcmp.lt.s32.totalorder %v335, 15
    %v365 = vsel %vm364, %v335, 15
    %vm366 = vcmp.lt.s32.totalorder %v336, 15
    %v367 = vsel %vm366, %v336, 15
    %vm368 = vcmp.lt.s32.totalorder %v337, 15
    %v369 = vsel %vm368, %v337, 15
    %v370 = vsel %vm194, %v148, %v339
    %v371 = vsel %vm195, %v151, %v341
    %v372 = vsel %vm196, %v154, %v343
    %v373 = vsel %vm197, %v157, %v345
    %v374 = vsel %vm198, %v160, %v347
    %v375 = vsel %vm199, %v163, %v349
    %v376 = vsel %vm200, %v166, %v351
    %v377 = vsel %vm201, %v169, %v353
    %v378 = vsel %vm202, %v172, %v355
    %v379 = vsel %vm203, %v175, %v357
    %v380 = vsel %vm204, %v178, %v359
    %v381 = vsel %vm205, %v181, %v361
    %v382 = vsel %vm206, %v184, %v363
    %v383 = vsel %vm207, %v187, %v365
    %v384 = vsel %vm208, %v190, %v367
    %v385 = vsel %vm209, %v193, %v369
    %v386 = vadd.s32 %v130, %v370
    %v387 = vadd.s32 %v131, %v371
    %v388 = vadd.s32 %v132, %v372
    %v389 = vadd.s32 %v133, %v373
    %v390 = vadd.s32 %v134, %v374
    %v391 = vadd.s32 %v135, %v375
    %v392 = vadd.s32 %v136, %v376
    %v393 = vadd.s32 %v137, %v377
    %v394 = vadd.s32 %v138, %v378
    %v395 = vadd.s32 %v139, %v379
    %v396 = vadd.s32 %v140, %v380
    %v397 = vadd.s32 %v141, %v381
    %v398 = vadd.s32 %v142, %v382
    %v399 = vadd.s32 %v143, %v383
    %v400 = vadd.s32 %v144, %v384
    %v401 = vadd.s32 %v145, %v385
    %vm402 = vcmp.eq.s32.totalorder %v90, %v386
    %vm403 = vcmp.eq.s32.totalorder %v90, %v387
    %vm404 = vcmp.eq.s32.totalorder %v90, %v388
    %vm405 = vcmp.eq.s32.totalorder %v90, %v389
    %vm406 = vcmp.eq.s32.totalorder %v90, %v390
    %vm407 = vcmp.eq.s32.totalorder %v90, %v391
    %vm408 = vcmp.eq.s32.totalorder %v90, %v392
    %vm409 = vcmp.eq.s32.totalorder %v90, %v393
    %vm410 = vcmp.eq.s32.totalorder %v90, %v394
    %vm411 = vcmp.eq.s32.totalorder %v90, %v395
    %vm412 = vcmp.eq.s32.totalorder %v90, %v396
    %vm413 = vcmp.eq.s32.totalorder %v90, %v397
    %vm414 = vcmp.eq.s32.totalorder %v90, %v398
    %vm415 = vcmp.eq.s32.totalorder %v90, %v399
    %vm416 = vcmp.eq.s32.totalorder %v90, %v400
    %vm417 = vcmp.eq.s32.totalorder %v90, %v401
    %vm418 = vcmp.eq.s32.totalorder %v91, %v386
    %vm419 = vcmp.eq.s32.totalorder %v91, %v387
    %vm420 = vcmp.eq.s32.totalorder %v91, %v388
    %vm421 = vcmp.eq.s32.totalorder %v91, %v389
    %vm422 = vcmp.eq.s32.totalorder %v91, %v390
    %vm423 = vcmp.eq.s32.totalorder %v91, %v391
    %vm424 = vcmp.eq.s32.totalorder %v91, %v392
    %vm425 = vcmp.eq.s32.totalorder %v91, %v393
    %vm426 = vcmp.eq.s32.totalorder %v91, %v394
    %vm427 = vcmp.eq.s32.totalorder %v91, %v395
    %vm428 = vcmp.eq.s32.totalorder %v91, %v396
    %vm429 = vcmp.eq.s32.totalorder %v91, %v397
    %vm430 = vcmp.eq.s32.totalorder %v91, %v398
    %vm431 = vcmp.eq.s32.totalorder %v91, %v399
    %vm432 = vcmp.eq.s32.totalorder %v91, %v400
    %vm433 = vcmp.eq.s32.totalorder %v91, %v401
    %vm434 = vcmp.eq.s32.totalorder %v92, %v386
    %vm435 = vcmp.eq.s32.totalorder %v92, %v387
    %vm436 = vcmp.eq.s32.totalorder %v92, %v388
    %vm437 = vcmp.eq.s32.totalorder %v92, %v389
    %vm438 = vcmp.eq.s32.totalorder %v92, %v390
    %vm439 = vcmp.eq.s32.totalorder %v92, %v391
    %vm440 = vcmp.eq.s32.totalorder %v92, %v392
    %vm441 = vcmp.eq.s32.totalorder %v92, %v393
    %vm442 = vcmp.eq.s32.totalorder %v92, %v394
    %vm443 = vcmp.eq.s32.totalorder %v92, %v395
    %vm444 = vcmp.eq.s32.totalorder %v92, %v396
    %vm445 = vcmp.eq.s32.totalorder %v92, %v397
    %vm446 = vcmp.eq.s32.totalorder %v92, %v398
    %vm447 = vcmp.eq.s32.totalorder %v92, %v399
    %vm448 = vcmp.eq.s32.totalorder %v92, %v400
    %vm449 = vcmp.eq.s32.totalorder %v92, %v401
    %vm450 = vcmp.eq.s32.totalorder %v93, %v386
    %vm451 = vcmp.eq.s32.totalorder %v93, %v387
    %vm452 = vcmp.eq.s32.totalorder %v93, %v388
    %vm453 = vcmp.eq.s32.totalorder %v93, %v389
    %vm454 = vcmp.eq.s32.totalorder %v93, %v390
    %vm455 = vcmp.eq.s32.totalorder %v93, %v391
    %vm456 = vcmp.eq.s32.totalorder %v93, %v392
    %vm457 = vcmp.eq.s32.totalorder %v93, %v393
    %vm458 = vcmp.eq.s32.totalorder %v93, %v394
    %vm459 = vcmp.eq.s32.totalorder %v93, %v395
    %vm460 = vcmp.eq.s32.totalorder %v93, %v396
    %vm461 = vcmp.eq.s32.totalorder %v93, %v397
    %vm462 = vcmp.eq.s32.totalorder %v93, %v398
    %vm463 = vcmp.eq.s32.totalorder %v93, %v399
    %vm464 = vcmp.eq.s32.totalorder %v93, %v400
    %vm465 = vcmp.eq.s32.totalorder %v93, %v401
    %v466 = vsel %vm402, 1, 0
    %v467 = vsel %vm403, 1, 0
    %v468 = vsel %vm404, 1, 0
    %v469 = vsel %vm405, 1, 0
    %v470 = vsel %vm406, 1, 0
    %v471 = vsel %vm407, 1, 0
    %v472 = vsel %vm408, 1, 0
    %v473 = vsel %vm409, 1, 0
    %v474 = vsel %vm410, 1, 0
    %v475 = vsel %vm411, 1, 0
    %v476 = vsel %vm412, 1, 0
    %v477 = vsel %vm413, 1, 0
    %v478 = vsel %vm414, 1, 0
    %v479 = vsel %vm415, 1, 0
    %v480 = vsel %vm416, 1, 0
    %v481 = vsel %vm417, 1, 0
    %v482 = vsel %vm418, 1, 0
    %v483 = vsel %vm419, 1, 0
    %v484 = vsel %vm420, 1, 0
    %v485 = vsel %vm421, 1, 0
    %v486 = vsel %vm422, 1, 0
    %v487 = vsel %vm423, 1, 0
    %v488 = vsel %vm424, 1, 0
    %v489 = vsel %vm425, 1, 0
    %v490 = vsel %vm426, 1, 0
    %v491 = vsel %vm427, 1, 0
    %v492 = vsel %vm428, 1, 0
    %v493 = vsel %vm429, 1, 0
    %v494 = vsel %vm430, 1, 0
    %v495 = vsel %vm431, 1, 0
    %v496 = vsel %vm432, 1, 0
    %v497 = vsel %vm433, 1, 0
    %v498 = vsel %vm434, 1, 0
    %v499 = vsel %vm435, 1, 0
    %v500 = vsel %vm436, 1, 0
    %v501 = vsel %vm437, 1, 0
    %v502 = vsel %vm438, 1, 0
    %v503 = vsel %vm439, 1, 0
    %v504 = vsel %vm440, 1, 0
    %v505 = vsel %vm441, 1, 0
    %v506 = vsel %vm442, 1, 0
    %v507 = vsel %vm443, 1, 0
    %v508 = vsel %vm444, 1, 0
    %v509 = vsel %vm445, 1, 0
    %v510 = vsel %vm446, 1, 0
    %v511 = vsel %vm447, 1, 0
    %v512 = vsel %vm448, 1, 0
    %v513 = vsel %vm449, 1, 0
    %v514 = vsel %vm450, 1, 0
    %v515 = vsel %vm451, 1, 0
    %v516 = vsel %vm452, 1, 0
    %v517 = vsel %vm453, 1, 0
    %v518 = vsel %vm454, 1, 0
    %v519 = vsel %vm455, 1, 0
    %v520 = vsel %vm456, 1, 0
    %v521 = vsel %vm457, 1, 0
    %v522 = vsel %vm458, 1, 0
    %v523 = vsel %vm459, 1, 0
    %v524 = vsel %vm460, 1, 0
    %v525 = vsel %vm461, 1, 0
    %v526 = vsel %vm462, 1, 0
    %v527 = vsel %vm463, 1, 0
    %v528 = vsel %vm464, 1, 0
    %v529 = vsel %vm465, 1, 0
    %v530 = vcvt.s32.f32 %v466
    %v531 = vcvt.s32.f32 %v467
    %v532 = vcvt.s32.f32 %v468
    %v533 = vcvt.s32.f32 %v469
    %v534 = vcvt.s32.f32 %v470
    %v535 = vcvt.s32.f32 %v471
    %v536 = vcvt.s32.f32 %v472
    %v537 = vcvt.s32.f32 %v473
    %v538 = vcvt.s32.f32 %v474
    %v539 = vcvt.s32.f32 %v475
    %v540 = vcvt.s32.f32 %v476
    %v541 = vcvt.s32.f32 %v477
    %v542 = vcvt.s32.f32 %v478
    %v543 = vcvt.s32.f32 %v479
    %v544 = vcvt.s32.f32 %v480
    %v545 = vcvt.s32.f32 %v481
    %v546 = vcvt.s32.f32 %v482
    %v547 = vcvt.s32.f32 %v483
    %v548 = vcvt.s32.f32 %v484
    %v549 = vcvt.s32.f32 %v485
    %v550 = vcvt.s32.f32 %v486
    %v551 = vcvt.s32.f32 %v487
    %v552 = vcvt.s32.f32 %v488
    %v553 = vcvt.s32.f32 %v489
    %v554 = vcvt.s32.f32 %v490
    %v555 = vcvt.s32.f32 %v491
    %v556 = vcvt.s32.f32 %v492
    %v557 = vcvt.s32.f32 %v493
    %v558 = vcvt.s32.f32 %v494
    %v559 = vcvt.s32.f32 %v495
    %v560 = vcvt.s32.f32 %v496
    %v561 = vcvt.s32.f32 %v497
    %v562 = vcvt.s32.f32 %v498
    %v563 = vcvt.s32.f32 %v499
    %v564 = vcvt.s32.f32 %v500
    %v565 = vcvt.s32.f32 %v501
    %v566 = vcvt.s32.f32 %v502
    %v567 = vcvt.s32.f32 %v503
    %v568 = vcvt.s32.f32 %v504
    %v569 = vcvt.s32.f32 %v505
    %v570 = vcvt.s32.f32 %v506
    %v571 = vcvt.s32.f32 %v507
    %v572 = vcvt.s32.f32 %v508
    %v573 = vcvt.s32.f32 %v509
    %v574 = vcvt.s32.f32 %v510
    %v575 = vcvt.s32.f32 %v511
    %v576 = vcvt.s32.f32 %v512
    %v577 = vcvt.s32.f32 %v513
    %v578 = vcvt.s32.f32 %v514
    %v579 = vcvt.s32.f32 %v515
    %v580 = vcvt.s32.f32 %v516
    %v581 = vcvt.s32.f32 %v517
    %v582 = vcvt.s32.f32 %v518
    %v583 = vcvt.s32.f32 %v519
    %v584 = vcvt.s32.f32 %v520
    %v585 = vcvt.s32.f32 %v521
    %v586 = vcvt.s32.f32 %v522
    %v587 = vcvt.s32.f32 %v523
    %v588 = vcvt.s32.f32 %v524
    %v589 = vcvt.s32.f32 %v525
    %v590 = vcvt.s32.f32 %v526
    %v591 = vcvt.s32.f32 %v527
    %v592 = vcvt.s32.f32 %v528
    %v593 = vcvt.s32.f32 %v529
    %v594 = vpack.c.bf16 %v546, %v530
    %v595 = vpack.c.bf16 %v547, %v531
    %v596 = vpack.c.bf16 %v548, %v532
    %v597 = vpack.c.bf16 %v549, %v533
    %v598 = vpack.c.bf16 %v550, %v534
    %v599 = vpack.c.bf16 %v551, %v535
    %v600 = vpack.c.bf16 %v552, %v536
    %v601 = vpack.c.bf16 %v553, %v537
    %v602 = vpack.c.bf16 %v554, %v538
    %v603 = vpack.c.bf16 %v555, %v539
    %v604 = vpack.c.bf16 %v556, %v540
    %v605 = vpack.c.bf16 %v557, %v541
    %v606 = vpack.c.bf16 %v558, %v542
    %v607 = vpack.c.bf16 %v559, %v543
    %v608 = vpack.c.bf16 %v560, %v544
    %v609 = vpack.c.bf16 %v561, %v545
    %v610 = vpack.c.bf16 %v578, %v562
    %v611 = vpack.c.bf16 %v579, %v563
    %v612 = vpack.c.bf16 %v580, %v564
    %v613 = vpack.c.bf16 %v581, %v565
    %v614 = vpack.c.bf16 %v582, %v566
    %v615 = vpack.c.bf16 %v583, %v567
    %v616 = vpack.c.bf16 %v584, %v568
    %v617 = vpack.c.bf16 %v585, %v569
    %v618 = vpack.c.bf16 %v586, %v570
    %v619 = vpack.c.bf16 %v587, %v571
    %v620 = vpack.c.bf16 %v588, %v572
    %v621 = vpack.c.bf16 %v589, %v573
    %v622 = vpack.c.bf16 %v590, %v574
    %v623 = vpack.c.bf16 %v591, %v575
    %v624 = vpack.c.bf16 %v592, %v576
    %v625 = vpack.c.bf16 %v593, %v577
    %vm626 = vcmask 261120
    %v628 = vsel %vm626, %v23, 0
    %630 = vmatprep.subr.bf16.mxu0 %v595
    %631 = vmatpush1.bf16.msra.mxu0 %v594
    %632 = vmatprep.subr.bf16.mxu0 %v611
    %633 = vmatpush1.bf16.msra.mxu0 %v610
    %634 = vmatprep.subr.bf16.mxu0 0
    %635 = vmatpush1.bf16.msra.mxu0 0
    %636 = vmatprep.subr.bf16.mxu0 0
    %637 = vmatpush1.bf16.msra.mxu0 0
    %638 = vmatprep.subr.bf16.mxu0 0
    %639 = vmatpush1.bf16.msra.mxu0 0
    %640 = vmatprep.subr.bf16.mxu0 0
    %641 = vmatpush1.bf16.msra.mxu0 0
    %642 = vmatprep.subr.bf16.mxu0 0
    %643 = vmatpush1.bf16.msra.mxu0 0
    %644 = vmatprep.subr.bf16.mxu0 0
    %645 = vmatpush1.bf16.msra.mxu0 0
    %646 = vmatprep.subr.bf16.mxu0 0
    %647 = vmatpush1.bf16.msra.mxu0 0
    %648 = vmatprep.subr.bf16.mxu0 0
    %649 = vmatpush1.bf16.msra.mxu0 0
    %650 = vmatprep.subr.bf16.mxu0 0
    %651 = vmatpush1.bf16.msra.mxu0 0
    %652 = vmatprep.subr.bf16.mxu0 0
    %653 = vmatpush1.bf16.msra.mxu0 0
    %654 = vmatprep.subr.bf16.mxu0 0
    %655 = vmatpush1.bf16.msra.mxu0 0
    %656 = vmatprep.subr.bf16.mxu0 0
    %657 = vmatpush1.bf16.msra.mxu0 0
    %658 = vmatprep.subr.bf16.mxu0 0
    %659 = vmatpush1.bf16.msra.mxu0 0
    %660 = vmatprep.subr.bf16.mxu0 0
    %661 = vmatpush1.bf16.msra.mxu0 0
    %662 = vmatprep.mubr.bf16.mxu0 0
    %663 = vmatmul.mubr.bf16.gmra.mrb[0].mxu0 %v628
    %v664 = vpop.f32.mrb[0].mxu0
    %v665 = vadd.f32 0.0, %v664
    %v666 = vpop.f32.mrb[0].mxu0
    %v667 = vadd.f32 0.0, %v666
    %v668 = vpop.f32.mrb[0].mxu0
    %v669 = vpop.f32.mrb[0].mxu0
    %670 = vdwg.mxu0
    %671 = vmatprep.subr.bf16.mxu0 %v597
    %672 = vmatpush1.bf16.msra.mxu0 %v596
    %673 = vmatprep.subr.bf16.mxu0 %v613
    %674 = vmatpush1.bf16.msra.mxu0 %v612
    %675 = vmatprep.subr.bf16.mxu0 0
    %676 = vmatpush1.bf16.msra.mxu0 0
    %677 = vmatprep.subr.bf16.mxu0 0
    %678 = vmatpush1.bf16.msra.mxu0 0
    %679 = vmatprep.subr.bf16.mxu0 0
    %680 = vmatpush1.bf16.msra.mxu0 0
    %681 = vmatprep.subr.bf16.mxu0 0
    %682 = vmatpush1.bf16.msra.mxu0 0
    %683 = vmatprep.subr.bf16.mxu0 0
    %684 = vmatpush1.bf16.msra.mxu0 0
    %685 = vmatprep.subr.bf16.mxu0 0
    %686 = vmatpush1.bf16.msra.mxu0 0
    %687 = vmatprep.subr.bf16.mxu0 0
    %688 = vmatpush1.bf16.msra.mxu0 0
    %689 = vmatprep.subr.bf16.mxu0 0
    %690 = vmatpush1.bf16.msra.mxu0 0
    %691 = vmatprep.subr.bf16.mxu0 0
    %692 = vmatpush1.bf16.msra.mxu0 0
    %693 = vmatprep.subr.bf16.mxu0 0
    %694 = vmatpush1.bf16.msra.mxu0 0
    %695 = vmatprep.subr.bf16.mxu0 0
    %696 = vmatpush1.bf16.msra.mxu0 0
    %697 = vmatprep.subr.bf16.mxu0 0
    %698 = vmatpush1.bf16.msra.mxu0 0
    %699 = vmatprep.subr.bf16.mxu0 0
    %700 = vmatpush1.bf16.msra.mxu0 0
    %701 = vmatprep.subr.bf16.mxu0 0
    %702 = vmatpush1.bf16.msra.mxu0 0
    %703 = vmatprep.mubr.bf16.mxu0 0
    %704 = vmatmul.mubr.bf16.gmra.mrb[0].mxu0 %v628
    %v705 = vpop.f32.mrb[0].mxu0
    %v706 = vadd.f32 0.0, %v705
    %v707 = vpop.f32.mrb[0].mxu0
    %v708 = vadd.f32 0.0, %v707
    %v709 = vpop.f32.mrb[0].mxu0
    %v710 = vpop.f32.mrb[0].mxu0
    %711 = vdwg.mxu0
    %712 = vmatprep.subr.bf16.mxu0 %v599
    %713 = vmatpush1.bf16.msra.mxu0 %v598
    %714 = vmatprep.subr.bf16.mxu0 %v615
    %715 = vmatpush1.bf16.msra.mxu0 %v614
    %716 = vmatprep.subr.bf16.mxu0 0
    %717 = vmatpush1.bf16.msra.mxu0 0
    %718 = vmatprep.subr.bf16.mxu0 0
    %719 = vmatpush1.bf16.msra.mxu0 0
    %720 = vmatprep.subr.bf16.mxu0 0
    %721 = vmatpush1.bf16.msra.mxu0 0
    %722 = vmatprep.subr.bf16.mxu0 0
    %723 = vmatpush1.bf16.msra.mxu0 0
    %724 = vmatprep.subr.bf16.mxu0 0
    %725 = vmatpush1.bf16.msra.mxu0 0
    %726 = vmatprep.subr.bf16.mxu0 0
    %727 = vmatpush1.bf16.msra.mxu0 0
    %728 = vmatprep.subr.bf16.mxu0 0
    %729 = vmatpush1.bf16.msra.mxu0 0
    %730 = vmatprep.subr.bf16.mxu0 0
    %731 = vmatpush1.bf16.msra.mxu0 0
    %732 = vmatprep.subr.bf16.mxu0 0
    %733 = vmatpush1.bf16.msra.mxu0 0
    %734 = vmatprep.subr.bf16.mxu0 0
    %735 = vmatpush1.bf16.msra.mxu0 0
    %736 = vmatprep.subr.bf16.mxu0 0
    %737 = vmatpush1.bf16.msra.mxu0 0
    %738 = vmatprep.subr.bf16.mxu0 0
    %739 = vmatpush1.bf16.msra.mxu0 0
    %740 = vmatprep.subr.bf16.mxu0 0
    %741 = vmatpush1.bf16.msra.mxu0 0
    %742 = vmatprep.subr.bf16.mxu0 0
    %743 = vmatpush1.bf16.msra.mxu0 0
    %744 = vmatprep.mubr.bf16.mxu0 0
    %745 = vmatmul.mubr.bf16.gmra.mrb[0].mxu0 %v628
    %v746 = vpop.f32.mrb[0].mxu0
    %v747 = vadd.f32 0.0, %v746
    %v748 = vpop.f32.mrb[0].mxu0
    %v749 = vadd.f32 0.0, %v748
    %v750 = vpop.f32.mrb[0].mxu0
    %v751 = vpop.f32.mrb[0].mxu0
    %752 = vdwg.mxu0
    %753 = vmatprep.subr.bf16.mxu0 %v601
    %754 = vmatpush1.bf16.msra.mxu0 %v600
    %755 = vmatprep.subr.bf16.mxu0 %v617
    %756 = vmatpush1.bf16.msra.mxu0 %v616
    %757 = vmatprep.subr.bf16.mxu0 0
    %758 = vmatpush1.bf16.msra.mxu0 0
    %759 = vmatprep.subr.bf16.mxu0 0
    %760 = vmatpush1.bf16.msra.mxu0 0
    %761 = vmatprep.subr.bf16.mxu0 0
    %762 = vmatpush1.bf16.msra.mxu0 0
    %763 = vmatprep.subr.bf16.mxu0 0
    %764 = vmatpush1.bf16.msra.mxu0 0
    %765 = vmatprep.subr.bf16.mxu0 0
    %766 = vmatpush1.bf16.msra.mxu0 0
    %767 = vmatprep.subr.bf16.mxu0 0
    %768 = vmatpush1.bf16.msra.mxu0 0
    %769 = vmatprep.subr.bf16.mxu0 0
    %770 = vmatpush1.bf16.msra.mxu0 0
    %771 = vmatprep.subr.bf16.mxu0 0
    %772 = vmatpush1.bf16.msra.mxu0 0
    %773 = vmatprep.subr.bf16.mxu0 0
    %774 = vmatpush1.bf16.msra.mxu0 0
    %775 = vmatprep.subr.bf16.mxu0 0
    %776 = vmatpush1.bf16.msra.mxu0 0
    %777 = vmatprep.subr.bf16.mxu0 0
    %778 = vmatpush1.bf16.msra.mxu0 0
    %779 = vmatprep.subr.bf16.mxu0 0
    %780 = vmatpush1.bf16.msra.mxu0 0
    %781 = vmatprep.subr.bf16.mxu0 0
    %782 = vmatpush1.bf16.msra.mxu0 0
    %783 = vmatprep.subr.bf16.mxu0 0
    %784 = vmatpush1.bf16.msra.mxu0 0
    %785 = vmatprep.mubr.bf16.mxu0 0
    %786 = vmatmul.mubr.bf16.gmra.mrb[0].mxu0 %v628
    %v787 = vpop.f32.mrb[0].mxu0
    %v788 = vadd.f32 0.0, %v787
    %v789 = vpop.f32.mrb[0].mxu0
    %v790 = vadd.f32 0.0, %v789
    %v791 = vpop.f32.mrb[0].mxu0
    %v792 = vpop.f32.mrb[0].mxu0
    %793 = vdwg.mxu0
    %794 = vmatprep.subr.bf16.mxu0 %v603
    %795 = vmatpush1.bf16.msra.mxu0 %v602
    %796 = vmatprep.subr.bf16.mxu0 %v619
    %797 = vmatpush1.bf16.msra.mxu0 %v618
    %798 = vmatprep.subr.bf16.mxu0 0
    %799 = vmatpush1.bf16.msra.mxu0 0
    %800 = vmatprep.subr.bf16.mxu0 0
    %801 = vmatpush1.bf16.msra.mxu0 0
    %802 = vmatprep.subr.bf16.mxu0 0
    %803 = vmatpush1.bf16.msra.mxu0 0
    %804 = vmatprep.subr.bf16.mxu0 0
    %805 = vmatpush1.bf16.msra.mxu0 0
    %806 = vmatprep.subr.bf16.mxu0 0
    %807 = vmatpush1.bf16.msra.mxu0 0
    %808 = vmatprep.subr.bf16.mxu0 0
    %809 = vmatpush1.bf16.msra.mxu0 0
    %810 = vmatprep.subr.bf16.mxu0 0
    %811 = vmatpush1.bf16.msra.mxu0 0
    %812 = vmatprep.subr.bf16.mxu0 0
    %813 = vmatpush1.bf16.msra.mxu0 0
    %814 = vmatprep.subr.bf16.mxu0 0
    %815 = vmatpush1.bf16.msra.mxu0 0
    %816 = vmatprep.subr.bf16.mxu0 0
    %817 = vmatpush1.bf16.msra.mxu0 0
    %818 = vmatprep.subr.bf16.mxu0 0
    %819 = vmatpush1.bf16.msra.mxu0 0
    %820 = vmatprep.subr.bf16.mxu0 0
    %821 = vmatpush1.bf16.msra.mxu0 0
    %822 = vmatprep.subr.bf16.mxu0 0
    %823 = vmatpush1.bf16.msra.mxu0 0
    %824 = vmatprep.subr.bf16.mxu0 0
    %825 = vmatpush1.bf16.msra.mxu0 0
    %826 = vmatprep.mubr.bf16.mxu0 0
    %827 = vmatmul.mubr.bf16.gmra.mrb[0].mxu0 %v628
    %v828 = vpop.f32.mrb[0].mxu0
    %v829 = vadd.f32 0.0, %v828
    %v830 = vpop.f32.mrb[0].mxu0
    %v831 = vadd.f32 0.0, %v830
    %v832 = vpop.f32.mrb[0].mxu0
    %v833 = vpop.f32.mrb[0].mxu0
    %834 = vdwg.mxu0
    %835 = vmatprep.subr.bf16.mxu0 %v605
    %836 = vmatpush1.bf16.msra.mxu0 %v604
    %837 = vmatprep.subr.bf16.mxu0 %v621
    %838 = vmatpush1.bf16.msra.mxu0 %v620
    %839 = vmatprep.subr.bf16.mxu0 0
    %840 = vmatpush1.bf16.msra.mxu0 0
    %841 = vmatprep.subr.bf16.mxu0 0
    %842 = vmatpush1.bf16.msra.mxu0 0
    %843 = vmatprep.subr.bf16.mxu0 0
    %844 = vmatpush1.bf16.msra.mxu0 0
    %845 = vmatprep.subr.bf16.mxu0 0
    %846 = vmatpush1.bf16.msra.mxu0 0
    %847 = vmatprep.subr.bf16.mxu0 0
    %848 = vmatpush1.bf16.msra.mxu0 0
    %849 = vmatprep.subr.bf16.mxu0 0
    %850 = vmatpush1.bf16.msra.mxu0 0
    %851 = vmatprep.subr.bf16.mxu0 0
    %852 = vmatpush1.bf16.msra.mxu0 0
    %853 = vmatprep.subr.bf16.mxu0 0
    %854 = vmatpush1.bf16.msra.mxu0 0
    %855 = vmatprep.subr.bf16.mxu0 0
    %856 = vmatpush1.bf16.msra.mxu0 0
    %857 = vmatprep.subr.bf16.mxu0 0
    %858 = vmatpush1.bf16.msra.mxu0 0
    %859 = vmatprep.subr.bf16.mxu0 0
    %860 = vmatpush1.bf16.msra.mxu0 0
    %861 = vmatprep.subr.bf16.mxu0 0
    %862 = vmatpush1.bf16.msra.mxu0 0
    %863 = vmatprep.subr.bf16.mxu0 0
    %864 = vmatpush1.bf16.msra.mxu0 0
    %865 = vmatprep.subr.bf16.mxu0 0
    %866 = vmatpush1.bf16.msra.mxu0 0
    %867 = vmatprep.mubr.bf16.mxu0 0
    %868 = vmatmul.mubr.bf16.gmra.mrb[0].mxu0 %v628
    %v869 = vpop.f32.mrb[0].mxu0
    %v870 = vadd.f32 0.0, %v869
    %v871 = vpop.f32.mrb[0].mxu0
    %v872 = vadd.f32 0.0, %v871
    %v873 = vpop.f32.mrb[0].mxu0
    %v874 = vpop.f32.mrb[0].mxu0
    %875 = vdwg.mxu0
    %876 = vmatprep.subr.bf16.mxu0 %v607
    %877 = vmatpush1.bf16.msra.mxu0 %v606
    %878 = vmatprep.subr.bf16.mxu0 %v623
    %879 = vmatpush1.bf16.msra.mxu0 %v622
    %880 = vmatprep.subr.bf16.mxu0 0
    %881 = vmatpush1.bf16.msra.mxu0 0
    %882 = vmatprep.subr.bf16.mxu0 0
    %883 = vmatpush1.bf16.msra.mxu0 0
    %884 = vmatprep.subr.bf16.mxu0 0
    %885 = vmatpush1.bf16.msra.mxu0 0
    %886 = vmatprep.subr.bf16.mxu0 0
    %887 = vmatpush1.bf16.msra.mxu0 0
    %888 = vmatprep.subr.bf16.mxu0 0
    %889 = vmatpush1.bf16.msra.mxu0 0
    %890 = vmatprep.subr.bf16.mxu0 0
    %891 = vmatpush1.bf16.msra.mxu0 0
    %892 = vmatprep.subr.bf16.mxu0 0
    %893 = vmatpush1.bf16.msra.mxu0 0
    %894 = vmatprep.subr.bf16.mxu0 0
    %895 = vmatpush1.bf16.msra.mxu0 0
    %896 = vmatprep.subr.bf16.mxu0 0
    %897 = vmatpush1.bf16.msra.mxu0 0
    %898 = vmatprep.subr.bf16.mxu0 0
    %899 = vmatpush1.bf16.msra.mxu0 0
    %900 = vmatprep.subr.bf16.mxu0 0
    %901 = vmatpush1.bf16.msra.mxu0 0
    %902 = vmatprep.subr.bf16.mxu0 0
    %903 = vmatpush1.bf16.msra.mxu0 0
    %904 = vmatprep.subr.bf16.mxu0 0
    %905 = vmatpush1.bf16.msra.mxu0 0
    %906 = vmatprep.subr.bf16.mxu0 0
    %907 = vmatpush1.bf16.msra.mxu0 0
    %908 = vmatprep.mubr.bf16.mxu0 0
    %909 = vmatmul.mubr.bf16.gmra.mrb[0].mxu0 %v628
    %v910 = vpop.f32.mrb[0].mxu0
    %v911 = vadd.f32 0.0, %v910
    %v912 = vpop.f32.mrb[0].mxu0
    %v913 = vadd.f32 0.0, %v912
    %v914 = vpop.f32.mrb[0].mxu0
    %v915 = vpop.f32.mrb[0].mxu0
    %916 = vdwg.mxu0
    %917 = vmatprep.subr.bf16.mxu0 %v609
    %918 = vmatpush1.bf16.msra.mxu0 %v608
    %919 = vmatprep.subr.bf16.mxu0 %v625
    %920 = vmatpush1.bf16.msra.mxu0 %v624
    %921 = vmatprep.subr.bf16.mxu0 0
    %922 = vmatpush1.bf16.msra.mxu0 0
    %923 = vmatprep.subr.bf16.mxu0 0
    %924 = vmatpush1.bf16.msra.mxu0 0
    %925 = vmatprep.subr.bf16.mxu0 0
    %926 = vmatpush1.bf16.msra.mxu0 0
    %927 = vmatprep.subr.bf16.mxu0 0
    %928 = vmatpush1.bf16.msra.mxu0 0
    %929 = vmatprep.subr.bf16.mxu0 0
    %930 = vmatpush1.bf16.msra.mxu0 0
    %931 = vmatprep.subr.bf16.mxu0 0
    %932 = vmatpush1.bf16.msra.mxu0 0
    %933 = vmatprep.subr.bf16.mxu0 0
    %934 = vmatpush1.bf16.msra.mxu0 0
    %935 = vmatprep.subr.bf16.mxu0 0
    %936 = vmatpush1.bf16.msra.mxu0 0
    %937 = vmatprep.subr.bf16.mxu0 0
    %938 = vmatpush1.bf16.msra.mxu0 0
    %939 = vmatprep.subr.bf16.mxu0 0
    %940 = vmatpush1.bf16.msra.mxu0 0
    %941 = vmatprep.subr.bf16.mxu0 0
    %942 = vmatpush1.bf16.msra.mxu0 0
    %943 = vmatprep.subr.bf16.mxu0 0
    %944 = vmatpush1.bf16.msra.mxu0 0
    %945 = vmatprep.subr.bf16.mxu0 0
    %946 = vmatpush1.bf16.msra.mxu0 0
    %947 = vmatprep.subr.bf16.mxu0 0
    %948 = vmatpush1.bf16.msra.mxu0 0
    %949 = vmatprep.mubr.bf16.mxu0 0
    %950 = vmatmul.mubr.bf16.gmra.mrb[0].mxu0 %v628
    %v951 = vpop.f32.mrb[0].mxu0
    %v952 = vadd.f32 0.0, %v951
    %v953 = vpop.f32.mrb[0].mxu0
    %v954 = vadd.f32 0.0, %v953
    %v955 = vpop.f32.mrb[0].mxu0
    %v956 = vpop.f32.mrb[0].mxu0
    %957 = vdwg.mxu0
    %959 = vst [vmem:[#allocation5] ss:$16 sm:$0x3] %v665
    %960 = vst [vmem:[#allocation5] ss:$16 sm:$0xc] %v665
    %961 = vst [vmem:[#allocation5] ss:$16 sm:$0x30] %v665
    %962 = vst [vmem:[#allocation5] ss:$16 sm:$0xc0] %v665
    %s964 = scalar_lea.vmem [#allocation5], 1
    %965 = vst [vmem:[%s964] ss:$16 sm:$0x3] %v667
    %966 = vst [vmem:[%s964] ss:$16 sm:$0xc] %v667
    %967 = vst [vmem:[%s964] ss:$16 sm:$0x30] %v667
    %968 = vst [vmem:[%s964] ss:$16 sm:$0xc0] %v667
    %s970 = scalar_lea.vmem [#allocation5], 2
    %971 = vst [vmem:[%s970] ss:$16 sm:$0x3] %v706
    %972 = vst [vmem:[%s970] ss:$16 sm:$0xc] %v706
    %973 = vst [vmem:[%s970] ss:$16 sm:$0x30] %v706
    %974 = vst [vmem:[%s970] ss:$16 sm:$0xc0] %v706
    %s976 = scalar_lea.vmem [#allocation5], 3
    %977 = vst [vmem:[%s976] ss:$16 sm:$0x3] %v708
    %978 = vst [vmem:[%s976] ss:$16 sm:$0xc] %v708
    %979 = vst [vmem:[%s976] ss:$16 sm:$0x30] %v708
    %980 = vst [vmem:[%s976] ss:$16 sm:$0xc0] %v708
    %s982 = scalar_lea.vmem [#allocation5], 4
    %983 = vst [vmem:[%s982] ss:$16 sm:$0x3] %v747
    %984 = vst [vmem:[%s982] ss:$16 sm:$0xc] %v747
    %985 = vst [vmem:[%s982] ss:$16 sm:$0x30] %v747
    %986 = vst [vmem:[%s982] ss:$16 sm:$0xc0] %v747
    %s988 = scalar_lea.vmem [#allocation5], 5
    %989 = vst [vmem:[%s988] ss:$16 sm:$0x3] %v749
    %990 = vst [vmem:[%s988] ss:$16 sm:$0xc] %v749
    %991 = vst [vmem:[%s988] ss:$16 sm:$0x30] %v749
    %992 = vst [vmem:[%s988] ss:$16 sm:$0xc0] %v749
    %s994 = scalar_lea.vmem [#allocation5], 6
    %995 = vst [vmem:[%s994] ss:$16 sm:$0x3] %v788
    %996 = vst [vmem:[%s994] ss:$16 sm:$0xc] %v788
    %997 = vst [vmem:[%s994] ss:$16 sm:$0x30] %v788
    %998 = vst [vmem:[%s994] ss:$16 sm:$0xc0] %v788
    %s1000 = scalar_lea.vmem [#allocation5], 7
    %1001 = vst [vmem:[%s1000] ss:$16 sm:$0x3] %v790
    %1002 = vst [vmem:[%s1000] ss:$16 sm:$0xc] %v790
    %1003 = vst [vmem:[%s1000] ss:$16 sm:$0x30] %v790
    %1004 = vst [vmem:[%s1000] ss:$16 sm:$0xc0] %v790
    %s1006 = scalar_lea.vmem [#allocation5], 8
    %1007 = vst [vmem:[%s1006] ss:$16 sm:$0x3] %v829
    %1008 = vst [vmem:[%s1006] ss:$16 sm:$0xc] %v829
    %1009 = vst [vmem:[%s1006] ss:$16 sm:$0x30] %v829
    %1010 = vst [vmem:[%s1006] ss:$16 sm:$0xc0] %v829
    %s1012 = scalar_lea.vmem [#allocation5], 9
    %1013 = vst [vmem:[%s1012] ss:$16 sm:$0x3] %v831
    %1014 = vst [vmem:[%s1012] ss:$16 sm:$0xc] %v831
    %1015 = vst [vmem:[%s1012] ss:$16 sm:$0x30] %v831
    %1016 = vst [vmem:[%s1012] ss:$16 sm:$0xc0] %v831
    %s1018 = scalar_lea.vmem [#allocation5], 10
    %1019 = vst [vmem:[%s1018] ss:$16 sm:$0x3] %v870
    %1020 = vst [vmem:[%s1018] ss:$16 sm:$0xc] %v870
    %1021 = vst [vmem:[%s1018] ss:$16 sm:$0x30] %v870
    %1022 = vst [vmem:[%s1018] ss:$16 sm:$0xc0] %v870
    %s1024 = scalar_lea.vmem [#allocation5], 11
    %1025 = vst [vmem:[%s1024] ss:$16 sm:$0x3] %v872
    %1026 = vst [vmem:[%s1024] ss:$16 sm:$0xc] %v872
    %1027 = vst [vmem:[%s1024] ss:$16 sm:$0x30] %v872
    %1028 = vst [vmem:[%s1024] ss:$16 sm:$0xc0] %v872
    %s1030 = scalar_lea.vmem [#allocation5], 12
    %1031 = vst [vmem:[%s1030] ss:$16 sm:$0x3] %v911
    %1032 = vst [vmem:[%s1030] ss:$16 sm:$0xc] %v911
    %1033 = vst [vmem:[%s1030] ss:$16 sm:$0x30] %v911
    %1034 = vst [vmem:[%s1030] ss:$16 sm:$0xc0] %v911
    %s1036 = scalar_lea.vmem [#allocation5], 13
    %1037 = vst [vmem:[%s1036] ss:$16 sm:$0x3] %v913
    %1038 = vst [vmem:[%s1036] ss:$16 sm:$0xc] %v913
    %1039 = vst [vmem:[%s1036] ss:$16 sm:$0x30] %v913
    %1040 = vst [vmem:[%s1036] ss:$16 sm:$0xc0] %v913
    %s1042 = scalar_lea.vmem [#allocation5], 14
    %1043 = vst [vmem:[%s1042] ss:$16 sm:$0x3] %v952
    %1044 = vst [vmem:[%s1042] ss:$16 sm:$0xc] %v952
    %1045 = vst [vmem:[%s1042] ss:$16 sm:$0x30] %v952
    %1046 = vst [vmem:[%s1042] ss:$16 sm:$0xc0] %v952
    %s1048 = scalar_lea.vmem [#allocation5], 15
    %1049 = vst [vmem:[%s1048] ss:$16 sm:$0x3] %v954
    %1050 = vst [vmem:[%s1048] ss:$16 sm:$0xc] %v954
    %1051 = vst [vmem:[%s1048] ss:$16 sm:$0x30] %v954
    %1052 = vst [vmem:[%s1048] ss:$16 sm:$0xc0] %v954
    // Predicated region
    $region10: #{tpu_custom_call.1} parent=1 // pred_check
      _
    $region11: #{tpu_custom_call.1} parent=1 // pred_check_branch
      %1054 = sbr.rel (0) target = $region13
    $region12: #{tpu_custom_call.1} parent=1 // pred_region
      %s1056 = ssub.s32 2048, 2048
      %1057 = vsyncadd [#allocation4], %s1056
      %s1058 = sshll.u32 [#allocation5], 4
      %s1059 = int_to_ptr.vmem [resolvable:$true] %s1058
      %1064 = dma.vmem_to_hbm [thread:$0]  %s1059, 2048, %s1, [#allocation4], 128, 128, 8
    $region13: #{tpu_custom_call.1} parent=1 // pred_fallthru
      _
    // Predicated region
    $region14: #{tpu_custom_call.1} parent=1 // pred_check
      _
    $region15: #{tpu_custom_call.1} parent=1 // pred_check_branch
      %1066 = sbr.rel (0) target = $region17
    $region16: #{tpu_custom_call.1} parent=1 // pred_region
      %1067 = dma.done [#allocation4], 2048
    $region17: #{tpu_custom_call.1} parent=1 // pred_fallthru
      _
    %1068 = vsyncpa [#allocation3], 1
    %1069 = vsyncpa [#allocation4], 1

</llo_original>
